<compile_context>
chip_gen: v5e
topology: v5e:2x2
jax: 0.10.0
libtpu: 0.0.40
codegen_flags: <defaults>
</compile_context>

<pallas_src>
import functools

import jax
import jax.numpy as jnp
import numpy as np
from jax.experimental import pallas as pl
from jax.experimental.pallas import tpu as pltpu


def _dmgi_kernel(a_ref, w_ref, b_ref, x_ref, xp_ref,
                 pos_ref, neg_ref, sum_ref, xw_ref, acc_ref):
    """One grid step == (relation r, adjacency row-tile t).

    a_ref  : (1, TM, N)      bf16  row tile of the normalized adjacency
    w_ref  : (1, Fin, Fout)  bf16  GCNConv weight of this relation
    b_ref  : (1, 1, 2*Fout)  f32   bias duplicated for the pos|neg halves
    x_ref  : (N, Fin)        bf16  node features (positive branch)
    xp_ref : (N, Fin)        bf16  row-permuted node features (negative branch)
    pos_ref: (1, TM, Fout)   f32   relu(A_tile @ XW  + b)
    neg_ref: (1, TM, Fout)   f32   relu(A_tile @ XpW + b)
    sum_ref: (1, 1, Fout)    f32   mean over nodes of the positive embedding
    xw_ref : (N, 2*Fout)     bf16  VMEM scratch: [X@W | Xperm@W] per relation
    acc_ref: (1, Fout)       f32   VMEM scratch: running node-sum (pos branch)
    """
    t = pl.program_id(1)
    last_t = pl.num_programs(1) - 1
    n_nodes = a_ref.shape[-1]          # full N (static)
    fout = sum_ref.shape[-1]           # Fout (static)

    # Once per relation: fused feature transform for both branches -> VMEM.
    @pl.when(t == 0)
    def _():
        w = w_ref[0]
        xw = jnp.dot(x_ref[...], w, preferred_element_type=jnp.float32)
        xpw = jnp.dot(xp_ref[...], w, preferred_element_type=jnp.float32)
        xw_ref[...] = jnp.concatenate([xw, xpw], axis=1).astype(xw_ref.dtype)
        acc_ref[...] = jnp.zeros_like(acc_ref)

    # Hot path: one fused, lane-dense propagation matmul for this row tile.
    h = jnp.dot(a_ref[0], xw_ref[...], preferred_element_type=jnp.float32)
    h = jnp.maximum(h + b_ref[0], 0.0)                 # (TM, 2*Fout)

    h_pos = h[:, :fout]
    pos_ref[0] = h_pos.astype(pos_ref.dtype)
    neg_ref[0] = h[:, fout:].astype(neg_ref.dtype)     # lane shift on XLU slot

    # Accumulate the node-sum of the positive half for the summary.
    acc_ref[...] += jnp.sum(h_pos, axis=0, keepdims=True)

    @pl.when(t == last_t)
    def _():
        sum_ref[0] = (acc_ref[...] * (1.0 / n_nodes)).astype(sum_ref.dtype)


def _pick_row_tile(n, cap=512):
    """Largest row tile <= cap that divides N (N assumed a multiple of 8)."""
    if n <= cap:
        return n
    for tm in (512, 384, 256, 128, 64, 32, 16, 8):
        if tm <= cap and n % tm == 0:
            return tm
    return n


@functools.partial(jax.jit, static_argnames=("tm",))
def dmgi_forward(a_hats, weights, biases, x, x_perm, *, tm=None):
    """DMGI forward for all relations with one pallas_call.

    a_hats : (R, N, N) f32, weights: (R, Fin, Fout) f32, biases: (R, Fout) f32
    x, x_perm: (N, Fin) f32
    returns (pos_hs, neg_hs, summaries): (R,N,Fout), (R,N,Fout), (R,1,Fout)
    """
    R, N, _ = a_hats.shape
    Fin = x.shape[1]
    Fout = weights.shape[2]
    if tm is None:
        tm = _pick_row_tile(N)
    assert N % tm == 0 and tm % 8 == 0, "row tile must be a /8 divisor of N"
    n_tiles = N // tm

    # bf16 inputs for MXU / HBM streams; f32 accumulation inside the kernel.
    a_bf = a_hats.astype(jnp.bfloat16)
    w_bf = weights.astype(jnp.bfloat16)
    x_bf = x.astype(jnp.bfloat16)
    xp_bf = x_perm.astype(jnp.bfloat16)
    b2 = jnp.concatenate([biases, biases], axis=-1)[:, None, :].astype(jnp.float32)

    grid_spec = pltpu.PrefetchScalarGridSpec(
        num_scalar_prefetch=0,
        grid=(R, n_tiles),
        in_specs=[
            pl.BlockSpec((1, tm, N), lambda r, t: (r, t, 0)),          # A row tile
            pl.BlockSpec((1, Fin, Fout), lambda r, t: (r, 0, 0)),      # W_r
            pl.BlockSpec((1, 1, 2 * Fout), lambda r, t: (r, 0, 0)),    # [b|b]_r
            pl.BlockSpec((N, Fin), lambda r, t: (0, 0)),               # X
            pl.BlockSpec((N, Fin), lambda r, t: (0, 0)),               # Xperm
        ],
        out_specs=[
            pl.BlockSpec((1, tm, Fout), lambda r, t: (r, t, 0)),       # pos
            pl.BlockSpec((1, tm, Fout), lambda r, t: (r, t, 0)),       # neg
            pl.BlockSpec((1, 1, Fout), lambda r, t: (r, 0, 0)),        # summary
        ],
        scratch_shapes=[
            pltpu.VMEM((N, 2 * Fout), jnp.bfloat16),   # cached [XW | XpW]
            pltpu.VMEM((1, Fout), jnp.float32),        # node-sum accumulator
        ],
    )

    out_shapes = (
        jax.ShapeDtypeStruct((R, N, Fout), jnp.float32),
        jax.ShapeDtypeStruct((R, N, Fout), jnp.float32),
        jax.ShapeDtypeStruct((R, 1, Fout), jnp.float32),
    )

    # Explicit VMEM budget: double-buffered tiles + resident blocks + scratch.
    bfb, f4 = 2, 4
    need = (2 * tm * N * bfb                 # A row tile (x2 buffers)
            + 2 * 2 * N * Fin * bfb          # X, Xperm blocks
            + 2 * Fin * Fout * bfb           # W block
            + 2 * 2 * Fout * f4              # bias block
            + 2 * 2 * tm * Fout * f4         # pos + neg output tiles
            + 2 * Fout * f4                  # summary tile
            + N * 2 * Fout * bfb + Fout * f4)  # scratch
    vmem_limit = int(min(max(2 * need + (8 << 20), 32 << 20), 64 << 20))

    flops = R * (4 * N * Fin * Fout + 4 * N * N * Fout)
    bytes_accessed = (R * N * N * bfb + 2 * N * Fin * bfb + R * Fin * Fout * bfb
                      + R * 2 * Fout * f4 + R * N * 2 * Fout * f4 + R * Fout * f4)

    pos_hs, neg_hs, summaries = pl.pallas_call(
        _dmgi_kernel,
        out_shape=out_shapes,
        grid_spec=grid_spec,
        compiler_params=pltpu.CompilerParams(
            dimension_semantics=("parallel", "arbitrary"),
            vmem_limit_bytes=vmem_limit),
        cost_estimate=pl.CostEstimate(
            flops=int(flops), transcendentals=0,
            bytes_accessed=int(bytes_accessed)),
    )(a_bf, w_bf, b2, x_bf, xp_bf)

    return pos_hs, neg_hs, summaries


# --------------------------- glue / parameter setup ---------------------------

def gcn_norm_dense(edge_index, num_nodes):
    """Dense symmetric-normalized adjacency with self loops (PyG gcn_norm)."""
    src, dst = edge_index
    adj = jnp.zeros((num_nodes, num_nodes), jnp.float32)
    adj = adj.at[dst, src].add(1.0)                       # messages src -> dst
    adj = adj + jnp.eye(num_nodes, dtype=jnp.float32)     # self loops
    deg = adj.sum(axis=1)
    dinv = jnp.where(deg > 0, 1.0 / jnp.sqrt(deg), 0.0)
    return dinv[:, None] * adj * dinv[None, :]


def xavier_uniform(key, shape):
    fan_in, fan_out = shape[-2], shape[-1]
    bound = float(np.sqrt(6.0 / (fan_in + fan_out)))
    return jax.random.uniform(key, shape, jnp.float32, -bound, bound)


if __name__ == "__main__":
    # Small, deterministic configuration.
    num_nodes = 64
    in_channels = 32
    out_channels = 32
    num_relations = 3
    num_edges = 128

    root = jax.random.PRNGKey(0)
    k_x, k_w, k_b, k_edges, k_perm, k_m, k_z = jax.random.split(root, 7)

    # Node features.
    x = jax.random.normal(k_x, (num_nodes, in_channels), jnp.float32)

    # Per-relation GCNConv parameters (glorot weights; small bias to exercise
    # the bias-add path — reset_parameters() would zero it).
    w_keys = jax.random.split(k_w, num_relations)
    weights = jnp.stack(
        [xavier_uniform(w_keys[r], (in_channels, out_channels))
         for r in range(num_relations)], axis=0)
    biases = 0.1 * jax.random.normal(k_b, (num_relations, out_channels), jnp.float32)

    # Unused-in-forward DMGI parameters (Bilinear M, embedding Z), for completeness.
    M_weight = xavier_uniform(k_m, (out_channels, out_channels))[None]
    M_bias = jnp.zeros((1,), jnp.float32)
    Z = xavier_uniform(k_z, (num_nodes, out_channels))

    # Random undirected edge_index per relation, densified + GCN-normalized.
    e_keys = jax.random.split(k_edges, num_relations)
    a_list = []
    for r in range(num_relations):
        ek = jax.random.randint(e_keys[r], (2, num_edges), 0, num_nodes)
        src = jnp.concatenate([ek[0], ek[1]])
        dst = jnp.concatenate([ek[1], ek[0]])
        a_list.append(gcn_norm_dense((src, dst), num_nodes))
    a_hats = jnp.stack(a_list, axis=0)

    # Negative branch: deterministic row permutation of x.
    # TODO(synk): F.dropout(p=0.5) is identity in eval mode and is omitted.
    perm = jax.random.permutation(k_perm, num_nodes)
    x_perm = x[perm]

    # tm=32 -> two row tiles per relation: exercises the pl.when init /
    # accumulate / finalize path of the row-tiled grid.
    pos_hs, neg_hs, summaries = dmgi_forward(
        a_hats, weights, biases, x, x_perm, tm=32)
    jax.block_until_ready((pos_hs, neg_hs, summaries))

    # Pure-JAX reference using the same bf16 input quantization as the kernel.
    hi = jax.lax.Precision.HIGHEST
    a_q = a_hats.astype(jnp.bfloat16).astype(jnp.float32)
    x_q = x.astype(jnp.bfloat16).astype(jnp.float32)
    xp_q = x_perm.astype(jnp.bfloat16).astype(jnp.float32)
    w_q = weights.astype(jnp.bfloat16).astype(jnp.float32)
    xw_q = jnp.einsum("nf,rfo->rno", x_q, w_q, precision=hi)
    xw_q = xw_q.astype(jnp.bfloat16).astype(jnp.float32)
    xpw_q = jnp.einsum("nf,rfo->rno", xp_q, w_q, precision=hi)
    xpw_q = xpw_q.astype(jnp.bfloat16).astype(jnp.float32)
    ref_pos = jax.nn.relu(
        jnp.einsum("rmn,rno->rmo", a_q, xw_q, precision=hi) + biases[:, None, :])
    ref_neg = jax.nn.relu(
        jnp.einsum("rmn,rno->rmo", a_q, xpw_q, precision=hi) + biases[:, None, :])
    ref_sum = ref_pos.mean(axis=1, keepdims=True)

    np.testing.assert_allclose(np.asarray(pos_hs), np.asarray(ref_pos),
                               rtol=1e-2, atol=1e-2)
    np.testing.assert_allclose(np.asarray(neg_hs), np.asarray(ref_neg),
                               rtol=1e-2, atol=1e-2)
    np.testing.assert_allclose(np.asarray(summaries), np.asarray(ref_sum),
                               rtol=1e-2, atol=1e-2)

    print("KERNEL_OK")
</pallas_src>

<mosaic_0001>
module attributes {stable_mosaic.version = 11 : i64} {
  func.func @_dmgi_kernel(%arg0: i32, %arg1: i32, %arg2: memref<1x32x64xbf16, #tpu.memory_space<vmem>>, %arg3: memref<1x32x32xbf16, #tpu.memory_space<vmem>>, %arg4: memref<1x1x64xf32, #tpu.memory_space<vmem>>, %arg5: memref<64x32xbf16, #tpu.memory_space<vmem>>, %arg6: memref<64x32xbf16, #tpu.memory_space<vmem>>, %arg7: memref<1x32x32xf32, #tpu.memory_space<vmem>>, %arg8: memref<1x32x32xf32, #tpu.memory_space<vmem>>, %arg9: memref<1x1x32xf32, #tpu.memory_space<vmem>>, %arg10: memref<64x64xbf16, #tpu.memory_space<vmem>>, %arg11: memref<1x32xf32, #tpu.memory_space<vmem>>) attributes {dimension_semantics = [#tpu.dimension_semantics<parallel>, #tpu.dimension_semantics<arbitrary>], iteration_bounds = array<i64: 3, 2>, scalar_prefetch = 0 : i64, scratch_operands = 2 : i64, tpu.core_type = #tpu.core_type<tc>, window_params = [{transform_indices = @transform_0, window_bounds = array<i64: 1, 32, 64>}, {transform_indices = @transform_1, window_bounds = array<i64: 1, 32, 32>}, {transform_indices = @transform_2, window_bounds = array<i64: 1, 1, 64>}, {pipeline_mode = #tpu.pipeline_mode<synchronous>, transform_indices = @transform_3, window_bounds = array<i64: 64, 32>}, {pipeline_mode = #tpu.pipeline_mode<synchronous>, transform_indices = @transform_4, window_bounds = array<i64: 64, 32>}, {transform_indices = @transform_5, window_bounds = array<i64: 1, 32, 32>}, {transform_indices = @transform_6, window_bounds = array<i64: 1, 32, 32>}, {transform_indices = @transform_7, window_bounds = array<i64: 1, 1, 32>}]} {
    %c0_i32 = arith.constant 0 : i32
    %0 = arith.cmpi eq, %arg1, %c0_i32 : i32
    %1 = arith.extui %0 : i1 to i32
    %c0_i32_0 = arith.constant 0 : i32
    %2 = arith.cmpi ne, %1, %c0_i32_0 : i32
    scf.if %2 {
      %c0_21 = arith.constant 0 : index
      %c0_22 = arith.constant 0 : index
      %c0_23 = arith.constant 0 : index
      %29 = vector.load %arg3[%c0_21, %c0_22, %c0_23] : memref<1x32x32xbf16, #tpu.memory_space<vmem>>, vector<1x32x32xbf16>
      %30 = vector.shape_cast %29 : vector<1x32x32xbf16> to vector<32x32xbf16>
      %c0_24 = arith.constant 0 : index
      %c0_25 = arith.constant 0 : index
      %31 = vector.load %arg5[%c0_24, %c0_25] : memref<64x32xbf16, #tpu.memory_space<vmem>>, vector<64x32xbf16>
      %cst_26 = arith.constant dense<0.000000e+00> : vector<64x32xf32>
      %32 = tpu.matmul %31, %30, %cst_26 {dimension_numbers = #tpu.dot_dimension_numbers<[1], [0], [0], [1], [0, 0, 1, 1], [], []>} : vector<64x32xbf16>, vector<32x32xbf16>, vector<64x32xf32> -> vector<64x32xf32>
      %c0_27 = arith.constant 0 : index
      %c0_28 = arith.constant 0 : index
      %33 = vector.load %arg6[%c0_27, %c0_28] : memref<64x32xbf16, #tpu.memory_space<vmem>>, vector<64x32xbf16>
      %cst_29 = arith.constant dense<0.000000e+00> : vector<64x32xf32>
      %34 = tpu.matmul %33, %30, %cst_29 {dimension_numbers = #tpu.dot_dimension_numbers<[1], [0], [0], [1], [0, 0, 1, 1], [], []>} : vector<64x32xbf16>, vector<32x32xbf16>, vector<64x32xf32> -> vector<64x32xf32>
      %35 = tpu.concatenate %32, %34 in 1 : vector<64x32xf32>, vector<64x32xf32> -> vector<64x64xf32>
      %36 = arith.truncf %35 : vector<64x64xf32> to vector<64x64xbf16>
      %c0_30 = arith.constant 0 : index
      %c0_31 = arith.constant 0 : index
      %37 = vector.load %arg10[%c0_30, %c0_31] : memref<64x64xbf16, #tpu.memory_space<vmem>>, vector<64x64xbf16>
      tpu.vector_store %arg10[%c0_30, %c0_31], %36 {strides = array<i32>} : memref<64x64xbf16, #tpu.memory_space<vmem>>, vector<64x64xbf16>,
      %cst_32 = arith.constant 0.000000e+00 : f32
      %38 = vector.broadcast %cst_32 : f32 to vector<1x32xf32>
      %c0_33 = arith.constant 0 : index
      %c0_34 = arith.constant 0 : index
      %39 = vector.load %arg11[%c0_33, %c0_34] : memref<1x32xf32, #tpu.memory_space<vmem>>, vector<1x32xf32>
      tpu.vector_store %arg11[%c0_33, %c0_34], %38 {strides = array<i32>} : memref<1x32xf32, #tpu.memory_space<vmem>>, vector<1x32xf32>,
    } else {
    }
    %c0 = arith.constant 0 : index
    %c0_1 = arith.constant 0 : index
    %c0_2 = arith.constant 0 : index
    %3 = vector.load %arg2[%c0, %c0_1, %c0_2] : memref<1x32x64xbf16, #tpu.memory_space<vmem>>, vector<1x32x64xbf16>
    %4 = vector.shape_cast %3 : vector<1x32x64xbf16> to vector<32x64xbf16>
    %c0_3 = arith.constant 0 : index
    %c0_4 = arith.constant 0 : index
    %5 = vector.load %arg10[%c0_3, %c0_4] : memref<64x64xbf16, #tpu.memory_space<vmem>>, vector<64x64xbf16>
    %cst = arith.constant dense<0.000000e+00> : vector<32x64xf32>
    %6 = tpu.matmul %4, %5, %cst {dimension_numbers = #tpu.dot_dimension_numbers<[1], [0], [0], [1], [0, 0, 1, 1], [], []>} : vector<32x64xbf16>, vector<64x64xbf16>, vector<32x64xf32> -> vector<32x64xf32>
    %c0_5 = arith.constant 0 : index
    %c0_6 = arith.constant 0 : index
    %c0_7 = arith.constant 0 : index
    %7 = vector.load %arg4[%c0_5, %c0_6, %c0_7] : memref<1x1x64xf32, #tpu.memory_space<vmem>>, vector<1x1x64xf32>
    %8 = vector.shape_cast %7 : vector<1x1x64xf32> to vector<1x64xf32>
    %9 = vector.broadcast %8 : vector<1x64xf32> to vector<32x64xf32>
    %10 = arith.addf %6, %9 : vector<32x64xf32>
    %cst_8 = arith.constant 0.000000e+00 : f32
    %11 = vector.broadcast %cst_8 : f32 to vector<32x64xf32>
    %12 = arith.maximumf %10, %11 : vector<32x64xf32>
    %13 = vector.extract_strided_slice %12 {offsets = [0, 0], sizes = [32, 32], strides = [1, 1]} : vector<32x64xf32> to vector<32x32xf32>
    %c0_9 = arith.constant 0 : index
    %c0_10 = arith.constant 0 : index
    %c0_11 = arith.constant 0 : index
    %14 = vector.load %arg7[%c0_9, %c0_10, %c0_11] : memref<1x32x32xf32, #tpu.memory_space<vmem>>, vector<1x32x32xf32>
    %15 = vector.shape_cast %14 : vector<1x32x32xf32> to vector<32x32xf32>
    %16 = vector.shape_cast %13 : vector<32x32xf32> to vector<1x32x32xf32>
    tpu.vector_store %arg7[%c0_9, %c0_10, %c0_11], %16 {strides = array<i32>} : memref<1x32x32xf32, #tpu.memory_space<vmem>>, vector<1x32x32xf32>,
    %17 = vector.extract_strided_slice %12 {offsets = [0, 32], sizes = [32, 32], strides = [1, 1]} : vector<32x64xf32> to vector<32x32xf32>
    %c0_12 = arith.constant 0 : index
    %c0_13 = arith.constant 0 : index
    %c0_14 = arith.constant 0 : index
    %18 = vector.load %arg8[%c0_12, %c0_13, %c0_14] : memref<1x32x32xf32, #tpu.memory_space<vmem>>, vector<1x32x32xf32>
    %19 = vector.shape_cast %18 : vector<1x32x32xf32> to vector<32x32xf32>
    %20 = vector.shape_cast %17 : vector<32x32xf32> to vector<1x32x32xf32>
    tpu.vector_store %arg8[%c0_12, %c0_13, %c0_14], %20 {strides = array<i32>} : memref<1x32x32xf32, #tpu.memory_space<vmem>>, vector<1x32x32xf32>,
    %c0_15 = arith.constant 0 : index
    %c0_16 = arith.constant 0 : index
    %21 = vector.load %arg11[%c0_15, %c0_16] : memref<1x32xf32, #tpu.memory_space<vmem>>, vector<1x32xf32>
    %cst_17 = arith.constant dense<0.000000e+00> : vector<32xf32>
    %22 = vector.multi_reduction <add>, %13, %cst_17 [0] : vector<32x32xf32> to vector<32xf32>
    %23 = vector.shape_cast %22 : vector<32xf32> to vector<1x32xf32>
    %24 = arith.addf %21, %23 : vector<1x32xf32>
    %c0_18 = arith.constant 0 : index
    %c0_19 = arith.constant 0 : index
    %25 = vector.load %arg11[%c0_18, %c0_19] : memref<1x32xf32, #tpu.memory_space<vmem>>, vector<1x32xf32>
    tpu.vector_store %arg11[%c0_18, %c0_19], %24 {strides = array<i32>} : memref<1x32xf32, #tpu.memory_space<vmem>>, vector<1x32xf32>,
    %c1_i32 = arith.constant 1 : i32
    %26 = arith.cmpi eq, %arg1, %c1_i32 : i32
    %27 = arith.extui %26 : i1 to i32
    %c0_i32_20 = arith.constant 0 : i32
    %28 = arith.cmpi ne, %27, %c0_i32_20 : i32
    scf.if %28 {
      %c0_21 = arith.constant 0 : index
      %c0_22 = arith.constant 0 : index
      %29 = vector.load %arg11[%c0_21, %c0_22] : memref<1x32xf32, #tpu.memory_space<vmem>>, vector<1x32xf32>
      %cst_23 = arith.constant 1.562500e-02 : f32
      %30 = vector.broadcast %cst_23 : f32 to vector<1x32xf32>
      %31 = arith.mulf %29, %30 : vector<1x32xf32>
      %c0_24 = arith.constant 0 : index
      %c0_25 = arith.constant 0 : index
      %c0_26 = arith.constant 0 : index
      %32 = vector.load %arg9[%c0_24, %c0_25, %c0_26] : memref<1x1x32xf32, #tpu.memory_space<vmem>>, vector<1x1x32xf32>
      %33 = vector.shape_cast %32 : vector<1x1x32xf32> to vector<1x32xf32>
      %34 = vector.shape_cast %31 : vector<1x32xf32> to vector<1x1x32xf32>
      tpu.vector_store %arg9[%c0_24, %c0_25, %c0_26], %34 {strides = array<i32>} : memref<1x1x32xf32, #tpu.memory_space<vmem>>, vector<1x1x32xf32>,
    } else {
    }
    return
  }
  func.func @transform_0(%arg0: i32, %arg1: i32) -> (i32, i32, i32) {
    %c0_i32 = arith.constant 0 : i32
    %c0_i32_0 = arith.constant 0 : i32
    return %arg0, %arg1, %c0_i32 : i32, i32, i32
  }
  func.func @transform_1(%arg0: i32, %arg1: i32) -> (i32, i32, i32) {
    %c0_i32 = arith.constant 0 : i32
    %c0_i32_0 = arith.constant 0 : i32
    %c0_i32_1 = arith.constant 0 : i32
    return %arg0, %c0_i32, %c0_i32_0 : i32, i32, i32
  }
  func.func @transform_2(%arg0: i32, %arg1: i32) -> (i32, i32, i32) {
    %c0_i32 = arith.constant 0 : i32
    %c0_i32_0 = arith.constant 0 : i32
    %c0_i32_1 = arith.constant 0 : i32
    return %arg0, %c0_i32, %c0_i32_0 : i32, i32, i32
  }
  func.func @transform_3(%arg0: i32, %arg1: i32) -> (i32, i32) {
    %c0_i32 = arith.constant 0 : i32
    %c0_i32_0 = arith.constant 0 : i32
    %c0_i32_1 = arith.constant 0 : i32
    return %c0_i32, %c0_i32_0 : i32, i32
  }
  func.func @transform_4(%arg0: i32, %arg1: i32) -> (i32, i32) {
    %c0_i32 = arith.constant 0 : i32
    %c0_i32_0 = arith.constant 0 : i32
    %c0_i32_1 = arith.constant 0 : i32
    return %c0_i32, %c0_i32_0 : i32, i32
  }
  func.func @transform_5(%arg0: i32, %arg1: i32) -> (i32, i32, i32) {
    %c0_i32 = arith.constant 0 : i32
    %c0_i32_0 = arith.constant 0 : i32
    return %arg0, %arg1, %c0_i32 : i32, i32, i32
  }
  func.func @transform_6(%arg0: i32, %arg1: i32) -> (i32, i32, i32) {
    %c0_i32 = arith.constant 0 : i32
    %c0_i32_0 = arith.constant 0 : i32
    return %arg0, %arg1, %c0_i32 : i32, i32, i32
  }
  func.func @transform_7(%arg0: i32, %arg1: i32) -> (i32, i32, i32) {
    %c0_i32 = arith.constant 0 : i32
    %c0_i32_0 = arith.constant 0 : i32
    %c0_i32_1 = arith.constant 0 : i32
    return %arg0, %c0_i32, %c0_i32_0 : i32, i32, i32
  }
}

</mosaic_0001>

<llo_original>
// kernel: dmgi_forward.1
$region0: #{dmgi_forward.1}
  #allocation0 [shape = 'u32[]', space=smem, size = 0x4, offset = 0x4, fixed_abs, tag = 'smem constant byte address 0x4 - core index']
  #allocation1 [shape = 'u32[72,128]{1,0:T(1,128)}', space=vmem, size = 0x9000, scoped, tag = 'internal scratch']
  #allocation2 [shape = 'bf16[64,64]{1,0:T(8,128)(2,1)}', space=vmem, size = 0x4000, scoped, tag = 'scratch operand']
  #allocation3 [shape = 'f32[1,32]{1,0:T(1,128)}', space=vmem, size = 0x200, scoped, tag = 'scratch operand']
  %s0 = inlined_call_operand.vmem [shape: bf16[3,64,64], index: 0, kind: input, shape index: {}]
  %s1 = inlined_call_operand.vmem [shape: bf16[3,32,32], index: 1, kind: input, shape index: {}]
  %s2 = inlined_call_operand.vmem [shape: f32[3,1,64], index: 2, kind: input, shape index: {}]
  %s3 = inlined_call_operand.vmem [shape: bf16[64,32], index: 3, kind: input, shape index: {}]
  %s4 = inlined_call_operand.vmem [shape: bf16[64,32], index: 4, kind: input, shape index: {}]
  %s5 = inlined_call_operand.vmem [shape: f32[3,64,32], index: 5, kind: output, shape index: {0}]
  %s6 = inlined_call_operand.vmem [shape: f32[3,64,32], index: 6, kind: output, shape index: {1}]
  %s7 = inlined_call_operand.hbm [shape: f32[3,1,32], index: 7, kind: output, shape index: {2}]
  %8 = xla_tuple %s5, %s6, %s7
  %s9 = sld [smem:[#allocation0]]
  $region77: #{dmgi_forward.1} parent=0
    _
  %s11 = ssub.s32 1, %s9
  %s12 = scalar_select 0, %s11, %s9
  $region1: #{dmgi_forward.1} parent=0
    #allocation4 [shape = 'u8[1024]{0}', space=vmem, size = 0x400, scoped, tag = 'output window, operand 2']
    #allocation5 [shape = 's32[2]{0}', space=sflag, size = 0x8, scoped, tag = 'scoped memory for dmgi_forward.1']
    %13 = vsyncpa [#allocation5], 0
    %s14 = scalar_lea.sflag [#allocation5], 1
    %15 = vsyncpa %s14, 0
    loop: start=0, step=1, limit=8
    $region2: #{dmgi_forward.1} parent=1 // loop_pre_header
      _
    $region3: #{dmgi_forward.1} parent=1 // loop_header
      %s17 = sphi 0, %s21
      %p18 = scmp.ge.s32.totalorder %s17, 8
      %s24 = sphi 0, %s36
      %s25 = sphi 0, %s32
      %s26 = sphi 0, %s24
      %s27 = sphi 0, %s25
      %s28 = sphi 0, %s26
      %s29 = sphi 0, %s27
      %s41 = sphi 0, %s43
      %s44 = sphi 0, %s41
      %s45 = sphi 0, %s44
      %s61 = sphi 0, %s45
      %s67 = sphi 0, %s69
      %s70 = sphi 0, %s67
      %s71 = sphi 0, %s70
      %s87 = sphi 0, %s71
      %s93 = sphi 0, %s95
      %s96 = sphi 0, %s93
      %s97 = sphi 0, %s96
      %s113 = sphi 0, %s97
      %s117 = sphi 0, %s117
      %s119 = sphi 0, %s117
      %s120 = sphi 0, %s119
      %s134 = sphi 0, %s120
      %s138 = sphi 0, %s138
      %s140 = sphi 0, %s138
      %s141 = sphi 0, %s140
      %s155 = sphi 0, %s141
      %s163 = sphi 0, %s165
      %s166 = sphi 0, %s163
      %s167 = sphi 0, %s166
      %s183 = sphi 0, %s167
      %s191 = sphi 0, %s193
      %s194 = sphi 0, %s191
      %s195 = sphi 0, %s194
      %s211 = sphi 0, %s195
      %s217 = sphi 0, %s219
      %s220 = sphi 0, %s217
      %s221 = sphi 0, %s220
      %s237 = sphi 0, %s221
    $region4: #{dmgi_forward.1} parent=1 // loop_header_branch
      %20 = sbr.rel (%p18) target = $region8
    $region5: #{dmgi_forward.1} parent=1 // loop_body
      %s22 = ssub.s32 %s17, 1
      %s23 = ssub.s32 %s17, 2
      %s30 = sadd.s32 1, %s25
      %p31 = scmp.ge.s32.totalorder %s30, 2
      %s32 = scalar_select %p31, 0, %s30
      %s33 = sadd.s32 1, %s24
      %s34 = scalar_select %p31, %s33, %s24
      %p35 = scmp.ge.s32.totalorder %s34, 3
      %s36 = scalar_select %p35, 0, %s34
      %s37 = ssub.s32 %s24, %s36
      %s38 = ssub.s32 %s25, %s32
      %s39 = sor.u32 %s37, %s38
      %p40 = scmp.eq.s32.totalorder %s39, 0
      %s42 = sadd.s32 %s41, 1
      %s43 = scalar_select %p40, %s41, %s42
      %p46 = pneg %p40
      %p47 = scmp.eq.s32.totalorder %s17, 5
      %p48 = por %p46, %p47
      %p49 = scmp.ne.s32.totalorder %s41, %s44
      %p50 = scmp.eq.s32.totalorder %s17, 0
      %p51 = por %p49, %p50
      %p52 = scmp.ne.s32.totalorder %s41, %s44
      %p53 = scmp.eq.s32.totalorder %s22, 5
      %p54 = por %p52, %p53
      %p55 = scmp.ne.s32.totalorder %s44, %s45
      %p56 = scmp.eq.s32.totalorder %s22, 0
      %p57 = por %p55, %p56
      %p58 = scmp.ne.s32.totalorder %s44, %s45
      %p59 = scmp.eq.s32.totalorder %s23, 5
      %p60 = por %p58, %p59
      %p62 = scmp.ne.s32.totalorder %s45, %s61
      %p63 = scmp.eq.s32.totalorder %s23, 0
      %p64 = por %p62, %p63
      %s65 = ssub.s32 %s24, %s36
      %p66 = scmp.eq.s32.totalorder %s65, 0
      %s68 = sadd.s32 %s67, 1
      %s69 = scalar_select %p66, %s67, %s68
      %p72 = pneg %p66
      %p73 = scmp.eq.s32.totalorder %s17, 5
      %p74 = por %p72, %p73
      %p75 = scmp.ne.s32.totalorder %s67, %s70
      %p76 = scmp.eq.s32.totalorder %s17, 0
      %p77 = por %p75, %p76
      %p78 = scmp.ne.s32.totalorder %s67, %s70
      %p79 = scmp.eq.s32.totalorder %s22, 5
      %p80 = por %p78, %p79
      %p81 = scmp.ne.s32.totalorder %s70, %s71
      %p82 = scmp.eq.s32.totalorder %s22, 0
      %p83 = por %p81, %p82
      %p84 = scmp.ne.s32.totalorder %s70, %s71
      %p85 = scmp.eq.s32.totalorder %s23, 5
      %p86 = por %p84, %p85
      %p88 = scmp.ne.s32.totalorder %s71, %s87
      %p89 = scmp.eq.s32.totalorder %s23, 0
      %p90 = por %p88, %p89
      %s91 = ssub.s32 %s24, %s36
      %p92 = scmp.eq.s32.totalorder %s91, 0
      %s94 = sadd.s32 %s93, 1
      %s95 = scalar_select %p92, %s93, %s94
      %p98 = pneg %p92
      %p99 = scmp.eq.s32.totalorder %s17, 5
      %p100 = por %p98, %p99
      %p101 = scmp.ne.s32.totalorder %s93, %s96
      %p102 = scmp.eq.s32.totalorder %s17, 0
      %p103 = por %p101, %p102
      %p104 = scmp.ne.s32.totalorder %s93, %s96
      %p105 = scmp.eq.s32.totalorder %s22, 5
      %p106 = por %p104, %p105
      %p107 = scmp.ne.s32.totalorder %s96, %s97
      %p108 = scmp.eq.s32.totalorder %s22, 0
      %p109 = por %p107, %p108
      %p110 = scmp.ne.s32.totalorder %s96, %s97
      %p111 = scmp.eq.s32.totalorder %s23, 5
      %p112 = por %p110, %p111
      %p114 = scmp.ne.s32.totalorder %s97, %s113
      %p115 = scmp.eq.s32.totalorder %s23, 0
      %p116 = por %p114, %p115
      %s118 = sadd.s32 %s117, 1
      %p121 = scmp.eq.s32.totalorder %s17, 5
      %p122 = scmp.ne.s32.totalorder %s117, %s119
      %p123 = scmp.eq.s32.totalorder %s17, 0
      %p124 = por %p122, %p123
      %p125 = scmp.ne.s32.totalorder %s117, %s119
      %p126 = scmp.eq.s32.totalorder %s22, 5
      %p127 = por %p125, %p126
      %p128 = scmp.ne.s32.totalorder %s119, %s120
      %p129 = scmp.eq.s32.totalorder %s22, 0
      %p130 = por %p128, %p129
      %p131 = scmp.ne.s32.totalorder %s119, %s120
      %p132 = scmp.eq.s32.totalorder %s23, 5
      %p133 = por %p131, %p132
      %p135 = scmp.ne.s32.totalorder %s120, %s134
      %p136 = scmp.eq.s32.totalorder %s23, 0
      %p137 = por %p135, %p136
      %s139 = sadd.s32 %s138, 1
      %p142 = scmp.eq.s32.totalorder %s17, 5
      %p143 = scmp.ne.s32.totalorder %s138, %s140
      %p144 = scmp.eq.s32.totalorder %s17, 0
      %p145 = por %p143, %p144
      %p146 = scmp.ne.s32.totalorder %s138, %s140
      %p147 = scmp.eq.s32.totalorder %s22, 5
      %p148 = por %p146, %p147
      %p149 = scmp.ne.s32.totalorder %s140, %s141
      %p150 = scmp.eq.s32.totalorder %s22, 0
      %p151 = por %p149, %p150
      %p152 = scmp.ne.s32.totalorder %s140, %s141
      %p153 = scmp.eq.s32.totalorder %s23, 5
      %p154 = por %p152, %p153
      %p156 = scmp.ne.s32.totalorder %s141, %s155
      %p157 = scmp.eq.s32.totalorder %s23, 0
      %p158 = por %p156, %p157
      %s159 = ssub.s32 %s24, %s36
      %s160 = ssub.s32 %s25, %s32
      %s161 = sor.u32 %s159, %s160
      %p162 = scmp.eq.s32.totalorder %s161, 0
      %s164 = sadd.s32 %s163, 1
      %s165 = scalar_select %p162, %s163, %s164
      %p168 = pneg %p162
      %p169 = scmp.eq.s32.totalorder %s17, 5
      %p170 = por %p168, %p169
      %p171 = scmp.ne.s32.totalorder %s163, %s166
      %p172 = scmp.eq.s32.totalorder %s17, 0
      %p173 = por %p171, %p172
      %p174 = scmp.ne.s32.totalorder %s163, %s166
      %p175 = scmp.eq.s32.totalorder %s22, 5
      %p176 = por %p174, %p175
      %p177 = scmp.ne.s32.totalorder %s166, %s167
      %p178 = scmp.eq.s32.totalorder %s22, 0
      %p179 = por %p177, %p178
      %p180 = scmp.ne.s32.totalorder %s166, %s167
      %p181 = scmp.eq.s32.totalorder %s23, 5
      %p182 = por %p180, %p181
      %p184 = scmp.ne.s32.totalorder %s167, %s183
      %p185 = scmp.eq.s32.totalorder %s23, 0
      %p186 = por %p184, %p185
      %s187 = ssub.s32 %s24, %s36
      %s188 = ssub.s32 %s25, %s32
      %s189 = sor.u32 %s187, %s188
      %p190 = scmp.eq.s32.totalorder %s189, 0
      %s192 = sadd.s32 %s191, 1
      %s193 = scalar_select %p190, %s191, %s192
      %p196 = pneg %p190
      %p197 = scmp.eq.s32.totalorder %s17, 5
      %p198 = por %p196, %p197
      %p199 = scmp.ne.s32.totalorder %s191, %s194
      %p200 = scmp.eq.s32.totalorder %s17, 0
      %p201 = por %p199, %p200
      %p202 = scmp.ne.s32.totalorder %s191, %s194
      %p203 = scmp.eq.s32.totalorder %s22, 5
      %p204 = por %p202, %p203
      %p205 = scmp.ne.s32.totalorder %s194, %s195
      %p206 = scmp.eq.s32.totalorder %s22, 0
      %p207 = por %p205, %p206
      %p208 = scmp.ne.s32.totalorder %s194, %s195
      %p209 = scmp.eq.s32.totalorder %s23, 5
      %p210 = por %p208, %p209
      %p212 = scmp.ne.s32.totalorder %s195, %s211
      %p213 = scmp.eq.s32.totalorder %s23, 0
      %p214 = por %p212, %p213
      %s215 = ssub.s32 %s24, %s36
      %p216 = scmp.eq.s32.totalorder %s215, 0
      %s218 = sadd.s32 %s217, 1
      %s219 = scalar_select %p216, %s217, %s218
      %p222 = pneg %p216
      %p223 = scmp.eq.s32.totalorder %s17, 5
      %p224 = por %p222, %p223
      %p225 = scmp.ne.s32.totalorder %s217, %s220
      %p226 = scmp.eq.s32.totalorder %s17, 0
      %p227 = por %p225, %p226
      %p228 = scmp.ne.s32.totalorder %s217, %s220
      %p229 = scmp.eq.s32.totalorder %s22, 5
      %p230 = por %p228, %p229
      %p231 = scmp.ne.s32.totalorder %s220, %s221
      %p232 = scmp.eq.s32.totalorder %s22, 0
      %p233 = por %p231, %p232
      %p234 = scmp.ne.s32.totalorder %s220, %s221
      %p235 = scmp.eq.s32.totalorder %s23, 5
      %p236 = por %p234, %p235
      %p238 = scmp.ne.s32.totalorder %s221, %s237
      %p239 = scmp.eq.s32.totalorder %s23, 0
      %p240 = por %p238, %p239
      %p241 = scmp.le.s32.totalorder 1, %s17
      %p242 = scmp.lt.s32.totalorder %s17, 7
      %p243 = pnand %p241, %p242
      %p244 = pneg %p243
      // Predicated region
      $region9: #{dmgi_forward.1} parent=5 // pred_check
        _
      $region10: #{dmgi_forward.1} parent=5 // pred_check_branch
        %246 = sbr.rel (%p243) target = $region12
      $region11: #{dmgi_forward.1} parent=5 // pred_region
        %s247 = ssub.s32 %s17, 1
        // Predicated region
        $region13: #{dmgi_forward.1} parent=11 // pred_check
          %p248 = pneg %p130
        $region14: #{dmgi_forward.1} parent=11 // pred_check_branch
          %250 = sbr.rel (%p248) target = $region16
        $region15: #{dmgi_forward.1} parent=11 // pred_region
          _
        $region16: #{dmgi_forward.1} parent=11 // pred_fallthru
          _
        // Predicated region
        $region17: #{dmgi_forward.1} parent=11 // pred_check
          %p251 = pneg %p151
        $region18: #{dmgi_forward.1} parent=11 // pred_check_branch
          %253 = sbr.rel (%p251) target = $region20
        $region19: #{dmgi_forward.1} parent=11 // pred_region
          _
        $region20: #{dmgi_forward.1} parent=11 // pred_fallthru
          _
      $region12: #{dmgi_forward.1} parent=5 // pred_fallthru
        _
      %p254 = scmp.lt.s32.totalorder %s17, 6
      // Predicated region
      $region21: #{dmgi_forward.1} parent=5 // pred_check
        %p255 = pneg %p254
      $region22: #{dmgi_forward.1} parent=5 // pred_check_branch
        %257 = sbr.rel (%p255) target = $region24
      $region23: #{dmgi_forward.1} parent=5 // pred_region
        // Predicated region
        $region25: #{dmgi_forward.1} parent=23 // pred_check
          %p258 = pneg %p51
        $region26: #{dmgi_forward.1} parent=23 // pred_check_branch
          %260 = sbr.rel (%p258) target = $region28
        $region27: #{dmgi_forward.1} parent=23 // pred_region
          %s261 = smul.u32 4, %s25
          %p262 = scmp.lt.s32.totalorder %s24, 2
          %s263 = scalar_select %p262, %s24, 2
          %p264 = scmp.lt.s32.totalorder %s261, 7
          %s265 = scalar_select %p264, %s261, 7
          %s266 = smul.addr %s263, 8
          %s267 = sadd.s32 %s265, %s266
          %s268 = smul.addr %s267, 4
          %s269 = scalar_lea.vmem %s0, %s268
          %s270 = smul.u32 4, %s25
        $region28: #{dmgi_forward.1} parent=23 // pred_fallthru
          _
        // Predicated region
        $region29: #{dmgi_forward.1} parent=23 // pred_check
          %p271 = pneg %p77
        $region30: #{dmgi_forward.1} parent=23 // pred_check_branch
          %273 = sbr.rel (%p271) target = $region32
        $region31: #{dmgi_forward.1} parent=23 // pred_region
          %p274 = scmp.lt.s32.totalorder %s24, 2
          %s275 = scalar_select %p274, %s24, 2
          %s276 = smul.addr %s275, 4
          %s277 = smul.addr %s276, 4
          %s278 = scalar_lea.vmem %s1, %s277
        $region32: #{dmgi_forward.1} parent=23 // pred_fallthru
          _
        // Predicated region
        $region33: #{dmgi_forward.1} parent=23 // pred_check
          %p279 = pneg %p103
        $region34: #{dmgi_forward.1} parent=23 // pred_check_branch
          %281 = sbr.rel (%p279) target = $region36
        $region35: #{dmgi_forward.1} parent=23 // pred_region
          %p282 = scmp.lt.s32.totalorder %s24, 2
          %s283 = scalar_select %p282, %s24, 2
          %s284 = scalar_lea.vmem %s2, %s283
        $region36: #{dmgi_forward.1} parent=23 // pred_fallthru
          _
      $region24: #{dmgi_forward.1} parent=5 // pred_fallthru
        _
      %p285 = scmp.le.s32.totalorder 1, %s17
      %p286 = scmp.lt.s32.totalorder %s17, 7
      %p287 = pnand %p285, %p286
      %p288 = pneg %p287
      // Predicated region
      $region37: #{dmgi_forward.1} parent=5 // pred_check
        _
      $region38: #{dmgi_forward.1} parent=5 // pred_check_branch
        %290 = sbr.rel (%p287) target = $region40
      $region39: #{dmgi_forward.1} parent=5 // pred_region
        %s291 = ssub.s32 %s17, 1
        %s292 = smul.u32 4, %s27
        %p293 = scmp.lt.s32.totalorder %s26, 2
        %s294 = scalar_select %p293, %s26, 2
        %p295 = scmp.lt.s32.totalorder %s292, 7
        %s296 = scalar_select %p295, %s292, 7
        %s297 = smul.addr %s294, 8
        %s298 = sadd.s32 %s296, %s297
        %s299 = smul.addr %s298, 4
        %s300 = scalar_lea.vmem %s0, %s299
        %p301 = pneg %p57
        %p302 = pneg %p54
        %p303 = scmp.lt.s32.totalorder %s26, 2
        %s304 = scalar_select %p303, %s26, 2
        %s305 = smul.addr %s304, 4
        %s306 = smul.addr %s305, 4
        %s307 = scalar_lea.vmem %s1, %s306
        %p308 = pneg %p83
        %p309 = pneg %p80
        %p310 = scmp.lt.s32.totalorder %s26, 2
        %s311 = scalar_select %p310, %s26, 2
        %s312 = scalar_lea.vmem %s2, %s311
        %p313 = pneg %p109
        %p314 = pneg %p106
        %p315 = pneg %p130
        %p316 = pneg %p127
        %p317 = pneg %p151
        %p318 = pneg %p148
        %p319 = pneg %p179
        %p320 = pneg %p176
        %s321 = smul.u32 4, %s27
        %p322 = scmp.lt.s32.totalorder %s26, 2
        %s323 = scalar_select %p322, %s26, 2
        %p324 = scmp.lt.s32.totalorder %s321, 7
        %s325 = scalar_select %p324, %s321, 7
        %s326 = smul.addr %s323, 8
        %s327 = sadd.s32 %s325, %s326
        %s328 = smul.addr %s327, 8
        %s329 = scalar_lea.vmem %s5, %s328
        %p330 = pneg %p207
        %p331 = pneg %p204
        %s332 = smul.u32 4, %s27
        %p333 = scmp.lt.s32.totalorder %s26, 2
        %s334 = scalar_select %p333, %s26, 2
        %p335 = scmp.lt.s32.totalorder %s332, 7
        %s336 = scalar_select %p335, %s332, 7
        %s337 = smul.addr %s334, 8
        %s338 = sadd.s32 %s336, %s337
        %s339 = smul.addr %s338, 8
        %s340 = scalar_lea.vmem %s6, %s339
        %p341 = pneg %p233
        %p342 = pneg %p230
        %s343 = sand.u32 %s220, 1
        %s344 = scalar_lea.sflag [#allocation5], %s343
        %s345 = sand.u32 %s220, 1
        %s346 = scalar_lea.vmem [#allocation4], %s345
        %s347 = smul.u32 4, %s27
        %p348 = scmp.lt.s32.totalorder %s26, 2
        %s349 = scalar_select %p348, %s26, 2
        %p350 = scmp.lt.s32.totalorder %s347, 7
        %s351 = scalar_select %p350, %s347, 7
        %s352 = smul.addr %s349, 8
        %s353 = sadd.s32 %s351, %s352
        %s354 = smul.addr %s353, 4
        %s355 = scalar_lea.vmem %s0, %s354
        %s356 = smul.u32 4, %s27
        %p357 = scmp.lt.s32.totalorder %s26, 2
        %s358 = scalar_select %p357, %s26, 2
        %s359 = smul.addr %s358, 4
        %s360 = smul.addr %s359, 4
        %s361 = scalar_lea.vmem %s1, %s360
        %p362 = scmp.lt.s32.totalorder %s26, 2
        %s363 = scalar_select %p362, %s26, 2
        %s364 = scalar_lea.vmem %s2, %s363
        %s365 = smul.u32 4, %s27
        %p366 = scmp.lt.s32.totalorder %s26, 2
        %s367 = scalar_select %p366, %s26, 2
        %p368 = scmp.lt.s32.totalorder %s365, 7
        %s369 = scalar_select %p368, %s365, 7
        %s370 = smul.addr %s367, 8
        %s371 = sadd.s32 %s369, %s370
        %s372 = smul.addr %s371, 8
        %s373 = scalar_lea.vmem %s5, %s372
        %s374 = smul.u32 4, %s27
        %s375 = smul.u32 4, %s27
        %p376 = scmp.lt.s32.totalorder %s26, 2
        %s377 = scalar_select %p376, %s26, 2
        %p378 = scmp.lt.s32.totalorder %s375, 7
        %s379 = scalar_select %p378, %s375, 7
        %s380 = smul.addr %s377, 8
        %s381 = sadd.s32 %s379, %s380
        %s382 = smul.addr %s381, 8
        %s383 = scalar_lea.vmem %s6, %s382
        %s384 = smul.u32 4, %s27
        %p386 = scmp.eq.s32.totalorder %s27, 0
        // Predicated region
        $region41: #{dmgi_forward.1} parent=39 // pred_check
          %p387 = pneg %p386
        $region42: #{dmgi_forward.1} parent=39 // pred_check_branch
          %389 = sbr.rel (%p387) target = $region44
        $region43: #{dmgi_forward.1} parent=39 // pred_region
          %v390 = vld [vmem:[%s361] sm:$0xf]
          %v391 = vld [vmem:[%s361 + $0x4] sm:$0xf]
          %v392 = vld [vmem:[%s361 + $0x8] sm:$0xf]
          %v393 = vld [vmem:[%s361 + $0xc] sm:$0xf]
          %v394 = vld [vmem:[%s3] sm:$0xf]
          %v395 = vld [vmem:[%s3 + $0x4] sm:$0xf]
          %v396 = vld [vmem:[%s3 + $0x8] sm:$0xf]
          %v397 = vld [vmem:[%s3 + $0xc] sm:$0xf]
          %v398 = vld [vmem:[%s3 + $0x10] sm:$0xf]
          %v399 = vld [vmem:[%s3 + $0x14] sm:$0xf]
          %v400 = vld [vmem:[%s3 + $0x18] sm:$0xf]
          %v401 = vld [vmem:[%s3 + $0x1c] sm:$0xf]
          %v410 = vunpack.c.l.b16 %v394
          %v411 = vunpack.c.l.b16 %v395
          %v412 = vunpack.c.l.b16 %v396
          %v413 = vunpack.c.l.b16 %v397
          %v414 = vunpack.c.l.b16 %v398
          %v415 = vunpack.c.l.b16 %v399
          %v416 = vunpack.c.l.b16 %v400
          %v417 = vunpack.c.l.b16 %v401
          %v418 = vpack.c.b16 %v411, %v410
          %v419 = vpack.c.b16 %v413, %v412
          %v420 = vpack.c.b16 %v415, %v414
          %v421 = vpack.c.b16 %v417, %v416
          %v426 = vunpack.c.l.b16 %v390
          %v427 = vunpack.c.l.b16 %v391
          %v428 = vunpack.c.l.b16 %v392
          %v429 = vunpack.c.l.b16 %v393
          %v430 = vpack.c.b16 %v427, %v426
          %v431 = vpack.c.b16 %v429, %v428
          %vm434 = vcmask 261120
          %v436 = vsel %vm434, %v418, 0
          %v439 = vsel %vm434, %v419, 0
          %v442 = vsel %vm434, %v420, 0
          %v445 = vsel %vm434, %v421, 0
          %447 = vmatpush.bf16.msra.mxu0 0
          %448 = vmatpush.bf16.msra.mxu0 0
          %449 = vmatpush.bf16.msra.mxu0 0
          %450 = vmatpush.bf16.msra.mxu0 0
          %451 = vmatpush.bf16.msra.mxu0 0
          %452 = vmatpush.bf16.msra.mxu0 0
          %453 = vmatpush.bf16.msra.mxu0 %v431
          %454 = vmatpush.bf16.msra.mxu0 %v430
          %455 = vmatmul.bf16.gmra.mxu0 %v436
          %v456 = vpop.f32.mrf.mxu0
          %v457 = vadd.f32 0.0, %v456
          %v458 = vpop.f32.mrf.mxu0
          %v459 = vadd.f32 0.0, %v458
          %460 = vmatmul.bf16.gmra.mxu0 %v439
          %v461 = vpop.f32.mrf.mxu0
          %v462 = vadd.f32 0.0, %v461
          %v463 = vpop.f32.mrf.mxu0
          %v464 = vadd.f32 0.0, %v463
          %465 = vmatmul.bf16.gmra.mxu0 %v442
          %v466 = vpop.f32.mrf.mxu0
          %v467 = vadd.f32 0.0, %v466
          %v468 = vpop.f32.mrf.mxu0
          %v469 = vadd.f32 0.0, %v468
          %470 = vmatmul.bf16.gmra.mxu0 %v445
          %v471 = vpop.f32.mrf.mxu0
          %v472 = vadd.f32 0.0, %v471
          %v473 = vpop.f32.mrf.mxu0
          %v474 = vadd.f32 0.0, %v473
          %475 = vdwg.mxu0
          %v476 = vld [vmem:[%s4] sm:$0xf]
          %v477 = vld [vmem:[%s4 + $0x4] sm:$0xf]
          %v478 = vld [vmem:[%s4 + $0x8] sm:$0xf]
          %v479 = vld [vmem:[%s4 + $0xc] sm:$0xf]
          %v480 = vld [vmem:[%s4 + $0x10] sm:$0xf]
          %v481 = vld [vmem:[%s4 + $0x14] sm:$0xf]
          %v482 = vld [vmem:[%s4 + $0x18] sm:$0xf]
          %v483 = vld [vmem:[%s4 + $0x1c] sm:$0xf]
          %v492 = vunpack.c.l.b16 %v476
          %v493 = vunpack.c.l.b16 %v477
          %v494 = vunpack.c.l.b16 %v478
          %v495 = vunpack.c.l.b16 %v479
          %v496 = vunpack.c.l.b16 %v480
          %v497 = vunpack.c.l.b16 %v481
          %v498 = vunpack.c.l.b16 %v482
          %v499 = vunpack.c.l.b16 %v483
          %v500 = vpack.c.b16 %v493, %v492
          %v501 = vpack.c.b16 %v495, %v494
          %v502 = vpack.c.b16 %v497, %v496
          %v503 = vpack.c.b16 %v499, %v498
          %v505 = vsel %vm434, %v500, 0
          %v508 = vsel %vm434, %v501, 0
          %v511 = vsel %vm434, %v502, 0
          %v514 = vsel %vm434, %v503, 0
          %516 = vmatpush.bf16.msra.mxu0 0
          %517 = vmatpush.bf16.msra.mxu0 0
          %518 = vmatpush.bf16.msra.mxu0 0
          %519 = vmatpush.bf16.msra.mxu0 0
          %520 = vmatpush.bf16.msra.mxu0 0
          %521 = vmatpush.bf16.msra.mxu0 0
          %522 = vmatpush.bf16.msra.mxu0 %v431
          %523 = vmatpush.bf16.msra.mxu0 %v430
          %524 = vmatmul.bf16.gmra.mxu0 %v505
          %v525 = vpop.f32.mrf.mxu0
          %v526 = vadd.f32 0.0, %v525
          %v527 = vpop.f32.mrf.mxu0
          %v528 = vadd.f32 0.0, %v527
          %529 = vmatmul.bf16.gmra.mxu0 %v508
          %v530 = vpop.f32.mrf.mxu0
          %v531 = vadd.f32 0.0, %v530
          %v532 = vpop.f32.mrf.mxu0
          %v533 = vadd.f32 0.0, %v532
          %534 = vmatmul.bf16.gmra.mxu0 %v511
          %v535 = vpop.f32.mrf.mxu0
          %v536 = vadd.f32 0.0, %v535
          %v537 = vpop.f32.mrf.mxu0
          %v538 = vadd.f32 0.0, %v537
          %539 = vmatmul.bf16.gmra.mxu0 %v514
          %v540 = vpop.f32.mrf.mxu0
          %v541 = vadd.f32 0.0, %v540
          %v542 = vpop.f32.mrf.mxu0
          %v543 = vadd.f32 0.0, %v542
          %544 = vdwg.mxu0
          %553 = vrot.lane.b32.xlu0 %v526, 32
          %v554 = vpop.permute.xlu0 %553
          %555 = vrot.lane.b32.xlu0 %v528, 32
          %v556 = vpop.permute.xlu0 %555
          %557 = vrot.lane.b32.xlu0 %v531, 32
          %v558 = vpop.permute.xlu0 %557
          %559 = vrot.lane.b32.xlu0 %v533, 32
          %v560 = vpop.permute.xlu0 %559
          %561 = vrot.lane.b32.xlu0 %v536, 32
          %v562 = vpop.permute.xlu0 %561
          %563 = vrot.lane.b32.xlu0 %v538, 32
          %v564 = vpop.permute.xlu0 %563
          %565 = vrot.lane.b32.xlu0 %v541, 32
          %v566 = vpop.permute.xlu0 %565
          %567 = vrot.lane.b32.xlu0 %v543, 32
          %v568 = vpop.permute.xlu0 %567
          %v577 = vsel %vm434, %v457, %v554
          %v578 = vsel %vm434, %v459, %v556
          %v579 = vsel %vm434, %v462, %v558
          %v580 = vsel %vm434, %v464, %v560
          %v581 = vsel %vm434, %v467, %v562
          %v582 = vsel %vm434, %v469, %v564
          %v583 = vsel %vm434, %v472, %v566
          %v584 = vsel %vm434, %v474, %v568
          %v585 = vpack.c.bf16 %v577, %v577
          %v586 = vpack.c.bf16 %v578, %v578
          %v587 = vpack.c.bf16 %v579, %v579
          %v588 = vpack.c.bf16 %v580, %v580
          %v589 = vpack.c.bf16 %v581, %v581
          %v590 = vpack.c.bf16 %v582, %v582
          %v591 = vpack.c.bf16 %v583, %v583
          %v592 = vpack.c.bf16 %v584, %v584
          %vm593 = vcmask 519168
          %594 = vst.msk [vmem:[#allocation2] sm:$0xf] %vm593, %v585
          %595 = vst.msk [vmem:[#allocation2 + $0x4] sm:$0xf] %vm593, %v586
          %596 = vst.msk [vmem:[#allocation2 + $0x8] sm:$0xf] %vm593, %v587
          %597 = vst.msk [vmem:[#allocation2 + $0xc] sm:$0xf] %vm593, %v588
          %598 = vst.msk [vmem:[#allocation2 + $0x10] sm:$0xf] %vm593, %v589
          %599 = vst.msk [vmem:[#allocation2 + $0x14] sm:$0xf] %vm593, %v590
          %600 = vst.msk [vmem:[#allocation2 + $0x18] sm:$0xf] %vm593, %v591
          %601 = vst.msk [vmem:[#allocation2 + $0x1c] sm:$0xf] %vm593, %v592
          %vm602 = vcmask 253952
          %603 = vst.msk [vmem:[#allocation3] sm:$0x1] %vm602, 0.0
        $region44: #{dmgi_forward.1} parent=39 // pred_fallthru
          _
        %v604 = vld [vmem:[%s355] sm:$0xf]
        %v605 = vld [vmem:[%s355 + $0x4] sm:$0xf]
        %v606 = vld [vmem:[%s355 + $0x8] sm:$0xf]
        %v607 = vld [vmem:[%s355 + $0xc] sm:$0xf]
        %v608 = vld [vmem:[#allocation2] sm:$0xf]
        %v609 = vld [vmem:[#allocation2 + $0x4] sm:$0xf]
        %v610 = vld [vmem:[#allocation2 + $0x8] sm:$0xf]
        %v611 = vld [vmem:[#allocation2 + $0xc] sm:$0xf]
        %v612 = vld [vmem:[#allocation2 + $0x10] sm:$0xf]
        %v613 = vld [vmem:[#allocation2 + $0x14] sm:$0xf]
        %v614 = vld [vmem:[#allocation2 + $0x18] sm:$0xf]
        %v615 = vld [vmem:[#allocation2 + $0x1c] sm:$0xf]
        %v616 = vld [vmem:[%s364] sm:$0x1]
        %v618 = vperm.slane %v616, 0
        %v624 = vunpack.c.l.b16 %v604
        %v625 = vunpack.c.l.b16 %v605
        %v626 = vunpack.c.l.b16 %v606
        %v627 = vunpack.c.l.b16 %v607
        %v628 = vpack.c.b16 %v625, %v624
        %v629 = vpack.c.b16 %v627, %v626
        %v638 = vunpack.c.l.b16 %v608
        %v639 = vunpack.c.l.b16 %v609
        %v640 = vunpack.c.l.b16 %v610
        %v641 = vunpack.c.l.b16 %v611
        %v642 = vunpack.c.l.b16 %v612
        %v643 = vunpack.c.l.b16 %v613
        %v644 = vunpack.c.l.b16 %v614
        %v645 = vunpack.c.l.b16 %v615
        %v646 = vpack.c.b16 %v639, %v638
        %v647 = vpack.c.b16 %v641, %v640
        %v648 = vpack.c.b16 %v643, %v642
        %v649 = vpack.c.b16 %v645, %v644
        %vm654 = vcmask 523264
        %v656 = vsel %vm654, %v628, 0
        %v659 = vsel %vm654, %v629, 0
        %661 = vmatpush.bf16.msra.mxu0 0
        %662 = vmatpush.bf16.msra.mxu0 0
        %663 = vmatpush.bf16.msra.mxu0 0
        %664 = vmatpush.bf16.msra.mxu0 0
        %665 = vmatpush.bf16.msra.mxu0 %v649
        %666 = vmatpush.bf16.msra.mxu0 %v648
        %667 = vmatpush.bf16.msra.mxu0 %v647
        %668 = vmatpush.bf16.msra.mxu0 %v646
        %669 = vmatmul.bf16.gmra.mxu0 %v656
        %v670 = vpop.f32.mrf.mxu0
        %v671 = vadd.f32 %v618, %v670
        %v672 = vpop.f32.mrf.mxu0
        %v673 = vadd.f32 %v618, %v672
        %674 = vmatmul.bf16.gmra.mxu0 %v659
        %v675 = vpop.f32.mrf.mxu0
        %v676 = vadd.f32 %v618, %v675
        %v677 = vpop.f32.mrf.mxu0
        %v678 = vadd.f32 %v618, %v677
        %679 = vdwg.mxu0
        %v680 = vmax.f32 %v671, 0.0
        %v681 = vmax.f32 %v673, 0.0
        %v682 = vmax.f32 %v676, 0.0
        %v683 = vmax.f32 %v678, 0.0
        %vm684 = vcmask 261120
        %685 = vst.msk [vmem:[%s373] sm:$0xff] %vm684, %v680
        %686 = vst.msk [vmem:[%s373 + $0x8] sm:$0xff] %vm684, %v681
        %687 = vst.msk [vmem:[%s373 + $0x10] sm:$0xff] %vm684, %v682
        %688 = vst.msk [vmem:[%s373 + $0x18] sm:$0xff] %vm684, %v683
        %693 = vrot.lane.b32.xlu0 %v680, 96
        %v694 = vpop.permute.xlu0 %693
        %695 = vrot.lane.b32.xlu0 %v681, 96
        %v696 = vpop.permute.xlu0 %695
        %697 = vrot.lane.b32.xlu0 %v682, 96
        %v698 = vpop.permute.xlu0 %697
        %699 = vrot.lane.b32.xlu0 %v683, 96
        %v700 = vpop.permute.xlu0 %699
        %705 = vst.msk [vmem:[%s383] sm:$0xff] %vm684, %v694
        %706 = vst.msk [vmem:[%s383 + $0x8] sm:$0xff] %vm684, %v696
        %707 = vst.msk [vmem:[%s383 + $0x10] sm:$0xff] %vm684, %v698
        %708 = vst.msk [vmem:[%s383 + $0x18] sm:$0xff] %vm684, %v700
        %v709 = vld [vmem:[#allocation3] sm:$0x1]
        %v710 = vsel %vm684, %v680, 0.0
        %v711 = vsel %vm684, %v681, 0.0
        %v712 = vadd.f32 %v710, %v711
        %v713 = vsel %vm684, %v682, 0.0
        %v714 = vadd.f32 %v712, %v713
        %v715 = vsel %vm684, %v683, 0.0
        %v716 = vadd.f32 %v714, %v715
        %v717 = vrot.slane %v716, 4
        %v718 = vadd.f32 %v716, %v717
        %v719 = vrot.slane %v718, 2
        %v720 = vadd.f32 %v718, %v719
        %v721 = vrot.slane %v720, 1
        %v722 = vadd.f32 %v720, %v721
        %v723 = vadd.f32 %v709, %v722
        %vm724 = vcmask 253952
        %725 = vst.msk [vmem:[#allocation3] sm:$0x1] %vm724, %v723
        %p726 = scmp.eq.s32.totalorder %s27, 1
        // Predicated region
        $region45: #{dmgi_forward.1} parent=39 // pred_check
          %p727 = pneg %p726
        $region46: #{dmgi_forward.1} parent=39 // pred_check_branch
          %729 = sbr.rel (%p727) target = $region48
        $region47: #{dmgi_forward.1} parent=39 // pred_region
          %v730 = vld [vmem:[#allocation3] sm:$0x1]
          %v731 = vmul.f32 %v730, 0.015625
          %732 = vst.msk [vmem:[%s346] sm:$0x1] %vm724, %v731
        $region48: #{dmgi_forward.1} parent=39 // pred_fallthru
          _
        %s733 = smul.u32 4, %s27
        %p734 = scmp.lt.s32.totalorder %s26, 2
        %s735 = scalar_select %p734, %s26, 2
        %p736 = scmp.lt.s32.totalorder %s733, 7
        %s737 = scalar_select %p736, %s733, 7
        %s738 = smul.addr %s735, 8
        %s739 = sadd.s32 %s737, %s738
        %s740 = smul.addr %s739, 8
        %s741 = scalar_lea.vmem %s5, %s740
        %s742 = smul.u32 4, %s27
        %p743 = scmp.lt.s32.totalorder %s26, 2
        %s744 = scalar_select %p743, %s26, 2
        %p745 = scmp.lt.s32.totalorder %s742, 7
        %s746 = scalar_select %p745, %s742, 7
        %s747 = smul.addr %s744, 8
        %s748 = sadd.s32 %s746, %s747
        %s749 = smul.addr %s748, 8
        %s750 = scalar_lea.vmem %s6, %s749
        %s751 = sand.u32 %s220, 1
        %s752 = scalar_lea.sflag [#allocation5], %s751
        %s753 = sand.u32 %s220, 1
        %s754 = scalar_lea.vmem [#allocation4], %s753
        // Predicated region
        $region49: #{dmgi_forward.1} parent=39 // pred_check
          %p755 = pneg %p176
        $region50: #{dmgi_forward.1} parent=39 // pred_check_branch
          %757 = sbr.rel (%p755) target = $region52
        $region51: #{dmgi_forward.1} parent=39 // pred_region
          %s758 = smul.u32 4, %s27
        $region52: #{dmgi_forward.1} parent=39 // pred_fallthru
          _
        // Predicated region
        $region53: #{dmgi_forward.1} parent=39 // pred_check
          %p759 = pneg %p204
        $region54: #{dmgi_forward.1} parent=39 // pred_check_branch
          %761 = sbr.rel (%p759) target = $region56
        $region55: #{dmgi_forward.1} parent=39 // pred_region
          %s762 = smul.u32 4, %s27
        $region56: #{dmgi_forward.1} parent=39 // pred_fallthru
          _
        // Predicated region
        $region57: #{dmgi_forward.1} parent=39 // pred_check
          %p763 = pneg %p230
        $region58: #{dmgi_forward.1} parent=39 // pred_check_branch
          %765 = sbr.rel (%p763) target = $region60
        $region59: #{dmgi_forward.1} parent=39 // pred_region
          %767 = vsyncadd %s752, 0
          %s768 = scalar_lea.hbm %s7, %s26
          %s770 = sshll.u32 %s754, 4
          %s771 = int_to_ptr.vmem [resolvable:$true] %s770
          %s772 = sshll.u32 %s768, 4
          %s773 = int_to_ptr.hbm [resolvable:$true] %s772
          %775 = dma.vmem_to_hbm [thread:$0]  %s771, 16, %s773, %s752
        $region60: #{dmgi_forward.1} parent=39 // pred_fallthru
          _
      $region40: #{dmgi_forward.1} parent=5 // pred_fallthru
        _
      %p776 = scmp.le.s32.totalorder 2, %s17
      // Predicated region
      $region61: #{dmgi_forward.1} parent=5 // pred_check
        %p777 = pneg %p776
      $region62: #{dmgi_forward.1} parent=5 // pred_check_branch
        %779 = sbr.rel (%p777) target = $region64
      $region63: #{dmgi_forward.1} parent=5 // pred_region
        %s780 = ssub.s32 %s17, 2
        // Predicated region
        $region65: #{dmgi_forward.1} parent=63 // pred_check
          %p781 = pneg %p182
        $region66: #{dmgi_forward.1} parent=63 // pred_check_branch
          %783 = sbr.rel (%p781) target = $region68
        $region67: #{dmgi_forward.1} parent=63 // pred_region
          %s784 = smul.u32 4, %s29
          %p785 = scmp.lt.s32.totalorder %s28, 2
          %s786 = scalar_select %p785, %s28, 2
          %p787 = scmp.lt.s32.totalorder %s784, 7
          %s788 = scalar_select %p787, %s784, 7
          %s789 = smul.addr %s786, 8
          %s790 = sadd.s32 %s788, %s789
          %s791 = smul.addr %s790, 8
          %s792 = scalar_lea.vmem %s5, %s791
        $region68: #{dmgi_forward.1} parent=63 // pred_fallthru
          _
        // Predicated region
        $region69: #{dmgi_forward.1} parent=63 // pred_check
          %p793 = pneg %p210
        $region70: #{dmgi_forward.1} parent=63 // pred_check_branch
          %795 = sbr.rel (%p793) target = $region72
        $region71: #{dmgi_forward.1} parent=63 // pred_region
          %s796 = smul.u32 4, %s29
          %p797 = scmp.lt.s32.totalorder %s28, 2
          %s798 = scalar_select %p797, %s28, 2
          %p799 = scmp.lt.s32.totalorder %s796, 7
          %s800 = scalar_select %p799, %s796, 7
          %s801 = smul.addr %s798, 8
          %s802 = sadd.s32 %s800, %s801
          %s803 = smul.addr %s802, 8
          %s804 = scalar_lea.vmem %s6, %s803
        $region72: #{dmgi_forward.1} parent=63 // pred_fallthru
          _
        // Predicated region
        $region73: #{dmgi_forward.1} parent=63 // pred_check
          %p805 = pneg %p236
        $region74: #{dmgi_forward.1} parent=63 // pred_check_branch
          %807 = sbr.rel (%p805) target = $region76
        $region75: #{dmgi_forward.1} parent=63 // pred_region
          %s808 = sand.u32 %s221, 1
          %s809 = scalar_lea.sflag [#allocation5], %s808
          %s810 = sand.u32 %s221, 1
          %s811 = scalar_lea.vmem [#allocation4], %s810
          %813 = dma.done %s809, 16
        $region76: #{dmgi_forward.1} parent=63 // pred_fallthru
          _
      $region64: #{dmgi_forward.1} parent=5 // pred_fallthru
        _
    $region6: #{dmgi_forward.1} parent=1 // loop_footer
      %s21 = sadd.s32 1, %s17
    $region7: #{dmgi_forward.1} parent=1 // loop_footer_branch
      %16 = sbr.rel target = $region3
    $region8: #{dmgi_forward.1} parent=1 // loop_exit
      _
    %814 = vsyncpa [#allocation5], 1
    %s815 = scalar_lea.sflag [#allocation5], 1
    %816 = vsyncpa %s815, 1

</llo_original>
